<compile_context>
chip_gen: v7x
topology: tpu7x:2x2x1
jax: 0.10.0
libtpu: 0.0.40
codegen_flags: <defaults>
</compile_context>

<pallas_src>
import functools
import math
from collections import defaultdict

import numpy as np
import jax
import jax.numpy as jnp
from jax.experimental import pallas as pl
from jax.experimental.pallas import tpu as pltpu


def _round_up(a, m):
    return (a + m - 1) // m * m


def _cdiv(a, m):
    return (a + m - 1) // m


# ----------------------------- filter construction (glue, numpy) ----------------
def kaiser_sinc_filter1d(cutoff, half_width, kernel_size):
    even = kernel_size % 2 == 0
    half_size = kernel_size // 2
    delta_f = 4 * half_width
    A = 2.285 * (half_size - 1) * math.pi * delta_f + 7.95
    if A > 50.0:
        beta = 0.1102 * (A - 8.7)
    elif A >= 21.0:
        beta = 0.5842 * (A - 21) ** 0.4 + 0.07886 * (A - 21.0)
    else:
        beta = 0.0
    # np.kaiser == torch.kaiser_window(..., periodic=False)
    window = np.kaiser(kernel_size, beta)
    if even:
        time = np.arange(-half_size, half_size) + 0.5
    else:
        time = np.arange(kernel_size) - half_size
    if cutoff == 0:
        return np.zeros(kernel_size, dtype=np.float32)
    filt = 2 * cutoff * window * np.sinc(2 * cutoff * time)
    filt = filt / filt.sum()
    return filt.astype(np.float32)  # shape (kernel_size,)


@functools.lru_cache(maxsize=None)
def _bitcast_low_half_is_index0():
    """Does lax.bitcast_convert_type(u32 -> bf16) place the low 16 bits at index 0?"""
    probe = jax.lax.bitcast_convert_type(
        jnp.array([0x3F800000], dtype=jnp.uint32), jnp.bfloat16)
    probe = jax.device_get(probe)          # 0x3F80 (== bf16 1.0) lives in the HIGH half
    return bool(float(probe[0, 1]) == 1.0)


# ----------------------------- Pallas kernel (hot path) -------------------------
def _upsample_kernel(x_main_ref, x_halo_ref, o_ref, win_ref, *,
                     offset_taps, ratio, t_chunk, n_chunks, pack_low_first):
    # x_main_ref: (r_tile, t_tile)        input tile of the (edge-padded) signal
    # x_halo_ref: (r_tile, halo_blk)      columns immediately following the tile
    # o_ref:      (ratio, r_tile, t_tile) phase-major output        (generic path)
    #             (r_tile, t_tile) uint32 packed bf16 phase pairs   (bf16/ratio==2)
    # win_ref:    (r_tile, t_chunk + halo_blk) scratch, only used for the last chunk
    for c in range(n_chunks):                                    # static unroll
        base = c * t_chunk
        if c == n_chunks - 1:
            # stitch tile tail + halo into one contiguous window (last chunk only)
            win_ref[:, :t_chunk] = x_main_ref[:, base:base + t_chunk]
            win_ref[:, t_chunk:] = x_halo_ref[...]

            def tap_slice(off):
                return win_ref[:, off:off + t_chunk]
        else:
            def tap_slice(off, _base=base):
                return x_main_ref[:, _base + off:_base + off + t_chunk]

        # one load per unique offset, multiply-accumulated into all phases
        acc = [None] * ratio
        for off, plist in offset_taps:
            v = tap_slice(off).astype(jnp.float32)
            for p, w in plist:                                   # w already holds ratio*filt[k]
                acc[p] = v * w if acc[p] is None else acc[p] + v * w
        for p in range(ratio):
            if acc[p] is None:
                acc[p] = jnp.zeros((win_ref.shape[0], t_chunk), jnp.float32)

        if pack_low_first is None:
            for p in range(ratio):
                o_ref[p, :, base:base + t_chunk] = acc[p].astype(o_ref.dtype)
        else:
            # bf16 / ratio==2: pack (phase0, phase1) into one uint32 lane so the
            # output buffer is bit-identical to the interleaved bf16 result.
            bits = [pltpu.bitcast(a.astype(jnp.bfloat16).astype(jnp.float32),
                                  jnp.uint32) for a in acc]      # bf16 bits in the top half
            lo, hi = (bits[0], bits[1]) if pack_low_first else (bits[1], bits[0])
            o_ref[:, base:base + t_chunk] = (lo >> 16) | (hi & jnp.uint32(0xFFFF0000))


# ----------------------------- module wrapper ------------------------------------
class UpSample1d:
    def __init__(self, ratio=2, kernel_size=None):
        self.ratio = ratio
        kernel_size = int(6 * ratio // 2) * 2 if kernel_size is None else kernel_size
        self.kernel_size = kernel_size
        self.stride = ratio
        self.pad = kernel_size // ratio - 1
        self.pad_left = self.pad * self.stride + (kernel_size - self.stride) // 2
        self.pad_right = self.pad * self.stride + (kernel_size - self.stride + 1) // 2

        filt_np = kaiser_sinc_filter1d(cutoff=0.5 / ratio, half_width=0.6 / ratio,
                                       kernel_size=kernel_size)
        self.filter = jnp.asarray(filt_np)   # used by the pure-JAX reference

        # Static polyphase tap table, grouped by input offset so each offset is
        # loaded exactly once per chunk; the `ratio` scale is folded into the
        # weights. For output n_out = u*stride + p, transposed-conv tap k
        # contributes x_pad[u + (p + pad_left - k)/stride].
        by_off = defaultdict(list)
        for p in range(self.stride):
            for k in range(kernel_size):
                d = p + self.pad_left - k
                if d % self.stride == 0:
                    assert d >= 0, "negative polyphase offset not expected"
                    by_off[d // self.stride].append((p, ratio * float(filt_np[k])))
        self.offset_taps = tuple(sorted((off, tuple(ps)) for off, ps in by_off.items()))
        self.max_off = max(off for off, _ in self.offset_taps)
        # Valid outputs must only read inside the 2*pad edge-replicated window
        # (same assumption the transposed-conv reference satisfies for defaults).
        assert self.max_off <= 2 * self.pad, "polyphase offsets exceed edge padding"
        self.halo_blk = _round_up(max(self.max_off, 1), 128)

    def __call__(self, x):
        B, C, T = x.shape
        ratio = self.ratio
        dtype = x.dtype
        itemsize = x.dtype.itemsize
        min_sub = {4: 8, 2: 16, 1: 32}.get(itemsize, 8)

        # ---- tiling (bigger row tiles, waste-aware time tiles) -----------------
        R = B * C
        r_tile = min(_round_up(R, min_sub), max(32, min_sub))
        R_pad = _round_up(R, r_tile)

        halo = self.halo_blk
        t_chunk = max(256, halo)                         # in-kernel chunk width (lanes)
        t_target = max(t_chunk, min(8192, _round_up(T, 128)))
        n_t = max(1, _cdiv(T, t_target))
        n_chunks = min(32, max(1, _cdiv(_cdiv(T, n_t), t_chunk)))
        t_tile = n_chunks * t_chunk
        n_t = _cdiv(T, t_tile)
        # keep >=2 grid steps when there's enough work (v7x has 2 TensorCores)
        if (R_pad // r_tile) * n_t < 2 and n_chunks > 1:
            n_chunks = _cdiv(n_chunks, 2)
            t_tile = n_chunks * t_chunk
            n_t = _cdiv(T, t_tile)
        assert t_tile % halo == 0
        U = n_t * t_tile                                 # padded input-rate length
        total_len = max(U + halo, T + 2 * self.pad)
        right_extra = total_len - (T + self.pad)

        # Flatten rows; replicate-pad time (spec semantics) + tiling/halo padding.
        # TODO(synk): fold the edge replication into the kernel's first/last-tile
        # handling to save this input-sized HBM pass.
        x2 = x.reshape(R, T)
        xp = jnp.pad(x2, ((0, R_pad - R), (self.pad, right_extra)), mode="edge")

        # bf16 + ratio==2: fuse the phase interleave via in-kernel uint32 packing.
        pack = (ratio == 2 and dtype == jnp.bfloat16)
        pack_low_first = _bitcast_low_half_is_index0() if pack else None

        if pack:
            out_shape = jax.ShapeDtypeStruct((R_pad, U), jnp.uint32)
            out_spec = pl.BlockSpec((r_tile, t_tile), lambda r, t: (r, t))
            out_block_bytes = r_tile * t_tile * 4
        else:
            out_shape = jax.ShapeDtypeStruct((ratio, R_pad, U), dtype)
            out_spec = pl.BlockSpec((ratio, r_tile, t_tile), lambda r, t: (0, r, t))
            out_block_bytes = ratio * r_tile * t_tile * itemsize

        # explicit VMEM budget (v5e's scoped default is 16 MiB; v7x physical 64 MiB)
        in_block_bytes = r_tile * (t_tile + halo) * itemsize
        scratch_bytes = r_tile * (t_chunk + halo) * itemsize
        need = 2 * (in_block_bytes + out_block_bytes) + scratch_bytes
        vmem_limit = int(min(max(2 * need, 32 << 20), 64 << 20))

        kern = functools.partial(
            _upsample_kernel, offset_taps=self.offset_taps, ratio=ratio,
            t_chunk=t_chunk, n_chunks=n_chunks, pack_low_first=pack_low_first)

        out = pl.pallas_call(
            kern,
            out_shape=out_shape,
            grid=(R_pad // r_tile, n_t),
            in_specs=[
                # main time tile (non-overlapping, lane/sublane dense)
                pl.BlockSpec((r_tile, t_tile), lambda r, t: (r, t)),
                # halo: the `halo` columns right after the tile (same array)
                pl.BlockSpec((r_tile, halo),
                             lambda r, t: (r, (t + 1) * (t_tile // halo))),
            ],
            out_specs=out_spec,
            scratch_shapes=[pltpu.VMEM((r_tile, t_chunk + halo), dtype)],
            compiler_params=pltpu.CompilerParams(
                dimension_semantics=("parallel", "parallel"),
                vmem_limit_bytes=vmem_limit),
        )(xp, xp)

        if pack:
            # free reinterpret: (R_pad, U) u32 == interleaved (R_pad, 2U) bf16
            y = jax.lax.bitcast_convert_type(out, jnp.bfloat16).reshape(R_pad, 2 * U)
        else:
            # Phase interleave left to XLA for the generic/f32 path (single pass).
            y = jnp.moveaxis(out, 0, -1).reshape(R_pad, U * ratio)
        y = y[:R, :ratio * T].reshape(B, C, ratio * T)
        return y


# ----------------------------- pure-JAX reference (for verification) -------------
def _reference_upsample(x, filt, ratio, kernel_size, pad, pad_left, pad_right):
    B, C, T = x.shape
    xp = jnp.pad(x, ((0, 0), (0, 0), (pad, pad)), mode="edge")
    ker = jnp.broadcast_to(jnp.flip(filt)[None, None, :], (C, 1, kernel_size))
    y = jax.lax.conv_general_dilated(
        xp, ker,
        window_strides=(1,),
        padding=[(kernel_size - 1, kernel_size - 1)],
        lhs_dilation=(ratio,),
        dimension_numbers=("NCH", "OIH", "NCH"),
        feature_group_count=C)
    y = ratio * y
    return y[..., pad_left:-pad_right]


if __name__ == "__main__":
    key = jax.random.PRNGKey(0)
    B, C, T = 2, 4, 16
    x = jax.random.normal(key, (B, C, T), dtype=jnp.float32)

    up = UpSample1d(ratio=2)

    # f32 path (phase-major kernel output + XLA interleave)
    y = up(x)
    jax.block_until_ready(y)
    assert y.shape == (B, C, 2 * T), y.shape
    y_ref = _reference_upsample(x, up.filter, up.ratio, up.kernel_size,
                                up.pad, up.pad_left, up.pad_right)
    np.testing.assert_allclose(np.asarray(y), np.asarray(y_ref), rtol=1e-5, atol=1e-5)

    # bf16 path (fused in-kernel phase interleave via uint32 packing)
    xb = x.astype(jnp.bfloat16)
    yb = up(xb)
    jax.block_until_ready(yb)
    assert yb.shape == (B, C, 2 * T) and yb.dtype == jnp.bfloat16, (yb.shape, yb.dtype)
    yb_ref = _reference_upsample(xb.astype(jnp.float32), up.filter, up.ratio,
                                 up.kernel_size, up.pad, up.pad_left, up.pad_right)
    np.testing.assert_allclose(np.asarray(yb.astype(jnp.float32)),
                               np.asarray(yb_ref), rtol=2e-2, atol=2e-2)

    print("KERNEL_OK")
</pallas_src>

<mosaic_0001>
module attributes {stable_mosaic.version = 11 : i64} {
  func.func @_upsample_kernel(%arg0: i32, %arg1: i32, %arg2: memref<8x256xf32, #tpu.memory_space<vmem>>, %arg3: memref<8x128xf32, #tpu.memory_space<vmem>>, %arg4: memref<2x8x256xf32, #tpu.memory_space<vmem>>, %arg5: memref<8x384xf32, #tpu.memory_space<vmem>>) attributes {dimension_semantics = [#tpu.dimension_semantics<parallel>, #tpu.dimension_semantics<parallel>], iteration_bounds = array<i64: 1, 1>, scalar_prefetch = 0 : i64, scratch_operands = 1 : i64, tpu.core_type = #tpu.core_type<tc>, window_params = [{transform_indices = @transform_0, window_bounds = array<i64: 8, 256>}, {transform_indices = @transform_1, window_bounds = array<i64: 8, 128>}, {transform_indices = @transform_2, window_bounds = array<i64: 2, 8, 256>}]} {
    %c0 = arith.constant 0 : index
    %c0_0 = arith.constant 0 : index
    %0 = vector.load %arg2[%c0, %c0_0] : memref<8x256xf32, #tpu.memory_space<vmem>>, vector<8x256xf32>
    %c0_1 = arith.constant 0 : index
    %c0_2 = arith.constant 0 : index
    %1 = vector.load %arg5[%c0_1, %c0_2] : memref<8x384xf32, #tpu.memory_space<vmem>>, vector<8x256xf32>
    tpu.vector_store %arg5[%c0_1, %c0_2], %0 {strides = array<i32>} : memref<8x384xf32, #tpu.memory_space<vmem>>, vector<8x256xf32>,
    %c0_3 = arith.constant 0 : index
    %c0_4 = arith.constant 0 : index
    %2 = vector.load %arg3[%c0_3, %c0_4] : memref<8x128xf32, #tpu.memory_space<vmem>>, vector<8x128xf32>
    %c0_5 = arith.constant 0 : index
    %c256 = arith.constant 256 : index
    %3 = vector.load %arg5[%c0_5, %c256] : memref<8x384xf32, #tpu.memory_space<vmem>>, vector<8x128xf32>
    tpu.vector_store %arg5[%c0_5, %c256], %2 {strides = array<i32>} : memref<8x384xf32, #tpu.memory_space<vmem>>, vector<8x128xf32>,
    %c0_6 = arith.constant 0 : index
    %c2 = arith.constant 2 : index
    %4 = vector.load %arg5[%c0_6, %c2] : memref<8x384xf32, #tpu.memory_space<vmem>>, vector<8x256xf32>
    %cst = arith.constant 0.00405793311 : f32
    %5 = vector.broadcast %cst : f32 to vector<8x256xf32>
    %6 = arith.mulf %4, %5 : vector<8x256xf32>
    %c0_7 = arith.constant 0 : index
    %c3 = arith.constant 3 : index
    %7 = vector.load %arg5[%c0_7, %c3] : memref<8x384xf32, #tpu.memory_space<vmem>>, vector<8x256xf32>
    %cst_8 = arith.constant -0.0510869287 : f32
    %8 = vector.broadcast %cst_8 : f32 to vector<8x256xf32>
    %9 = arith.mulf %7, %8 : vector<8x256xf32>
    %10 = arith.addf %6, %9 : vector<8x256xf32>
    %cst_9 = arith.constant 0.0187789276 : f32
    %11 = vector.broadcast %cst_9 : f32 to vector<8x256xf32>
    %12 = arith.mulf %7, %11 : vector<8x256xf32>
    %c0_10 = arith.constant 0 : index
    %c4 = arith.constant 4 : index
    %13 = vector.load %arg5[%c0_10, %c4] : memref<8x384xf32, #tpu.memory_space<vmem>>, vector<8x256xf32>
    %cst_11 = arith.constant 0.257145226 : f32
    %14 = vector.broadcast %cst_11 : f32 to vector<8x256xf32>
    %15 = arith.mulf %13, %14 : vector<8x256xf32>
    %16 = arith.addf %10, %15 : vector<8x256xf32>
    %cst_12 = arith.constant -0.115314752 : f32
    %17 = vector.broadcast %cst_12 : f32 to vector<8x256xf32>
    %18 = arith.mulf %13, %17 : vector<8x256xf32>
    %19 = arith.addf %12, %18 : vector<8x256xf32>
    %c0_13 = arith.constant 0 : index
    %c5 = arith.constant 5 : index
    %20 = vector.load %arg5[%c0_13, %c5] : memref<8x384xf32, #tpu.memory_space<vmem>>, vector<8x256xf32>
    %cst_14 = arith.constant 0.886419594 : f32
    %21 = vector.broadcast %cst_14 : f32 to vector<8x256xf32>
    %22 = arith.mulf %20, %21 : vector<8x256xf32>
    %23 = arith.addf %16, %22 : vector<8x256xf32>
    %cst_15 = arith.constant 0.886419594 : f32
    %24 = vector.broadcast %cst_15 : f32 to vector<8x256xf32>
    %25 = arith.mulf %20, %24 : vector<8x256xf32>
    %26 = arith.addf %19, %25 : vector<8x256xf32>
    %c0_16 = arith.constant 0 : index
    %c6 = arith.constant 6 : index
    %27 = vector.load %arg5[%c0_16, %c6] : memref<8x384xf32, #tpu.memory_space<vmem>>, vector<8x256xf32>
    %cst_17 = arith.constant -0.115314752 : f32
    %28 = vector.broadcast %cst_17 : f32 to vector<8x256xf32>
    %29 = arith.mulf %27, %28 : vector<8x256xf32>
    %30 = arith.addf %23, %29 : vector<8x256xf32>
    %cst_18 = arith.constant 0.257145226 : f32
    %31 = vector.broadcast %cst_18 : f32 to vector<8x256xf32>
    %32 = arith.mulf %27, %31 : vector<8x256xf32>
    %33 = arith.addf %26, %32 : vector<8x256xf32>
    %c0_19 = arith.constant 0 : index
    %c7 = arith.constant 7 : index
    %34 = vector.load %arg5[%c0_19, %c7] : memref<8x384xf32, #tpu.memory_space<vmem>>, vector<8x256xf32>
    %cst_20 = arith.constant 0.0187789276 : f32
    %35 = vector.broadcast %cst_20 : f32 to vector<8x256xf32>
    %36 = arith.mulf %34, %35 : vector<8x256xf32>
    %37 = arith.addf %30, %36 : vector<8x256xf32>
    %cst_21 = arith.constant -0.0510869287 : f32
    %38 = vector.broadcast %cst_21 : f32 to vector<8x256xf32>
    %39 = arith.mulf %34, %38 : vector<8x256xf32>
    %40 = arith.addf %33, %39 : vector<8x256xf32>
    %c0_22 = arith.constant 0 : index
    %c8 = arith.constant 8 : index
    %41 = vector.load %arg5[%c0_22, %c8] : memref<8x384xf32, #tpu.memory_space<vmem>>, vector<8x256xf32>
    %cst_23 = arith.constant 0.00405793311 : f32
    %42 = vector.broadcast %cst_23 : f32 to vector<8x256xf32>
    %43 = arith.mulf %41, %42 : vector<8x256xf32>
    %44 = arith.addf %40, %43 : vector<8x256xf32>
    %c0_24 = arith.constant 0 : index
    %c0_25 = arith.constant 0 : index
    %c0_26 = arith.constant 0 : index
    %45 = vector.load %arg4[%c0_24, %c0_25, %c0_26] : memref<2x8x256xf32, #tpu.memory_space<vmem>>, vector<1x8x256xf32>
    %46 = vector.shape_cast %45 : vector<1x8x256xf32> to vector<8x256xf32>
    %47 = vector.shape_cast %37 : vector<8x256xf32> to vector<1x8x256xf32>
    tpu.vector_store %arg4[%c0_24, %c0_25, %c0_26], %47 {strides = array<i32>} : memref<2x8x256xf32, #tpu.memory_space<vmem>>, vector<1x8x256xf32>,
    %c1 = arith.constant 1 : index
    %c0_27 = arith.constant 0 : index
    %c0_28 = arith.constant 0 : index
    %48 = vector.load %arg4[%c1, %c0_27, %c0_28] : memref<2x8x256xf32, #tpu.memory_space<vmem>>, vector<1x8x256xf32>
    %49 = vector.shape_cast %48 : vector<1x8x256xf32> to vector<8x256xf32>
    %50 = vector.shape_cast %44 : vector<8x256xf32> to vector<1x8x256xf32>
    tpu.vector_store %arg4[%c1, %c0_27, %c0_28], %50 {strides = array<i32>} : memref<2x8x256xf32, #tpu.memory_space<vmem>>, vector<1x8x256xf32>,
    return
  }
  func.func @transform_0(%arg0: i32, %arg1: i32) -> (i32, i32) {
    %c0_i32 = arith.constant 0 : i32
    return %arg0, %arg1 : i32, i32
  }
  func.func @transform_1(%arg0: i32, %arg1: i32) -> (i32, i32) {
    %c1_i32 = arith.constant 1 : i32
    %0 = arith.addi %arg1, %c1_i32 : i32
    %c2_i32 = arith.constant 2 : i32
    %1 = arith.muli %0, %c2_i32 : i32
    %c0_i32 = arith.constant 0 : i32
    return %arg0, %1 : i32, i32
  }
  func.func @transform_2(%arg0: i32, %arg1: i32) -> (i32, i32, i32) {
    %c0_i32 = arith.constant 0 : i32
    %c0_i32_0 = arith.constant 0 : i32
    return %c0_i32, %arg0, %arg1 : i32, i32, i32
  }
}

</mosaic_0001>

<llo_original>
// kernel: tpu_custom_call.1
$region0: #{tpu_custom_call.1}
  #allocation0 [shape = 'u32[]', space=smem, size = 0x4, offset = 0x4, fixed_abs, tag = 'smem constant byte address 0x4 - core index']
  #allocation1 [shape = 'u32[144,128]{1,0:T(1,128)}', space=vmem, size = 0x12000, scoped, tag = 'internal scratch']
  #allocation2 [shape = 'f32[8,384]{1,0:T(8,128)}', space=vmem, size = 0x3000, scoped, tag = 'scratch operand']
  %s0 = inlined_call_operand.hbm [shape: f32[8,384], index: 0, kind: input, shape index: {}]
  %s1 = inlined_call_operand.hbm [shape: f32[8,384], index: 1, kind: input, shape index: {}]
  %s2 = inlined_call_operand.hbm [shape: f32[2,8,256], index: 2, kind: output, shape index: {}]
  %s3 = sld [smem:[#allocation0]]
  $region26: #{tpu_custom_call.1} parent=0
    _
  %s5 = ssub.s32 1, %s3
  %s6 = scalar_select 0, %s5, %s3
  $region1: #{tpu_custom_call.1} parent=0
    #allocation3 [shape = 'u8[8192]{0}', space=vmem, size = 0x2000, scoped, tag = 'input window, operand 0, single buffered']
    #allocation4 [shape = 's32[1]{0}', space=sflag, size = 0x4, scoped, tag = 'scoped memory for tpu_custom_call.1']
    #allocation5 [shape = 's32[1]{0}', space=sflag, size = 0x4, scoped, tag = 'scoped memory for tpu_custom_call.1']
    #allocation6 [shape = 'u8[4096]{0}', space=vmem, size = 0x1000, scoped, tag = 'input window, operand 1, single buffered']
    #allocation7 [shape = 's32[1]{0}', space=sflag, size = 0x4, scoped, tag = 'scoped memory for tpu_custom_call.1']
    #allocation8 [shape = 'u8[16384]{0}', space=vmem, size = 0x4000, scoped, tag = 'output window, operand 0, single buffered']
    %7 = vsyncpa [#allocation4], 0
    %8 = vsyncpa [#allocation7], 0
    %9 = vsyncpa [#allocation5], 0
    // Predicated region
    $region2: #{tpu_custom_call.1} parent=1 // pred_check
      _
    $region3: #{tpu_custom_call.1} parent=1 // pred_check_branch
      %11 = sbr.rel (0) target = $region5
    $region4: #{tpu_custom_call.1} parent=1 // pred_region
      %s13 = ssub.s32 256, 256
      %14 = vsyncadd [#allocation4], %s13
      %s16 = sshll.u32 [#allocation3], 4
      %s17 = int_to_ptr.vmem [resolvable:$true] %s16
      %19 = dma.hbm_to_vmem [thread:$0]  %s0, 256, %s17, [#allocation4]
    $region5: #{tpu_custom_call.1} parent=1 // pred_fallthru
      _
    // Predicated region
    $region6: #{tpu_custom_call.1} parent=1 // pred_check
      _
    $region7: #{tpu_custom_call.1} parent=1 // pred_check_branch
      %21 = sbr.rel (0) target = $region9
    $region8: #{tpu_custom_call.1} parent=1 // pred_region
      %s22 = sadd.s32 0, 1
      %s23 = smul.u32 %s22, 2
      %s25 = ssub.s32 128, 128
      %26 = vsyncadd [#allocation7], %s25
      %s27 = smul.addr %s23, 128
      %s28 = scalar_lea.hbm %s1, %s27
      %s30 = sshll.u32 [#allocation6], 4
      %s31 = int_to_ptr.vmem [resolvable:$true] %s30
      %33 = dma.hbm_to_vmem [thread:$0]  %s28, 128, %s31, [#allocation7]
    $region9: #{tpu_custom_call.1} parent=1 // pred_fallthru
      _
    // Predicated region
    $region10: #{tpu_custom_call.1} parent=1 // pred_check
      _
    $region11: #{tpu_custom_call.1} parent=1 // pred_check_branch
      %35 = sbr.rel (0) target = $region13
    $region12: #{tpu_custom_call.1} parent=1 // pred_region
      %36 = dma.done [#allocation4], 256
    $region13: #{tpu_custom_call.1} parent=1 // pred_fallthru
      _
    // Predicated region
    $region14: #{tpu_custom_call.1} parent=1 // pred_check
      _
    $region15: #{tpu_custom_call.1} parent=1 // pred_check_branch
      %38 = sbr.rel (0) target = $region17
    $region16: #{tpu_custom_call.1} parent=1 // pred_region
      %39 = dma.done [#allocation7], 128
    $region17: #{tpu_custom_call.1} parent=1 // pred_fallthru
      _
    %s40 = sadd.s32 0, 1
    %s41 = smul.u32 %s40, 2
    %v42 = vld [vmem:[#allocation3] sm:$0xff]
    %v43 = vld [vmem:[#allocation3 + $0x8] sm:$0xff]
    %44 = vst [vmem:[#allocation2] sm:$0xff] %v42
    %45 = vst [vmem:[#allocation2 + $0x8] sm:$0xff] %v43
    %v46 = vld [vmem:[#allocation6] sm:$0xff]
    %47 = vst [vmem:[#allocation2 + $0x10] sm:$0xff] %v46
    %v48 = vld [vmem:[#allocation2] sm:$0xff]
    %v49 = vld [vmem:[#allocation2 + $0x8] sm:$0xff]
    %v50 = vld [vmem:[#allocation2 + $0x10] sm:$0xff]
    %v51 = vmul.f32 %v48, 0.004057933
    %v52 = vmul.f32 %v49, 0.004057933
    %v53 = vmul.f32 %v50, 0.004057933
    %v54 = vmul.f32 %v48, -0.05108693
    %v55 = vmul.f32 %v49, -0.05108693
    %v56 = vmul.f32 %v50, -0.05108693
    %60 = vrot.lane.b32.xlu0 %v54, 127
    %v61 = vpop.permute.xlu0 %60
    %62 = vrot.lane.b32.xlu0 %v55, 127
    %v63 = vpop.permute.xlu0 %62
    %64 = vrot.lane.b32.xlu0 %v56, 127
    %v65 = vpop.permute.xlu0 %64
    %vm66 = vcmask 1039360
    %v67 = vsel %vm66, %v61, %v63
    %v68 = vsel %vm66, %v63, %v65
    %v72 = vadd.f32 %v51, %v67
    %v73 = vadd.f32 %v52, %v68
    %v74 = vadd.f32 %v53, %v65
    %v75 = vmul.f32 %v48, 0.018778928
    %v76 = vmul.f32 %v49, 0.018778928
    %v77 = vmul.f32 %v50, 0.018778928
    %v78 = vmul.f32 %v48, 0.25714523
    %v79 = vmul.f32 %v49, 0.25714523
    %v80 = vmul.f32 %v50, 0.25714523
    %84 = vrot.lane.b32.xlu0 %v78, 126
    %v85 = vpop.permute.xlu0 %84
    %86 = vrot.lane.b32.xlu0 %v79, 126
    %v87 = vpop.permute.xlu0 %86
    %88 = vrot.lane.b32.xlu0 %v80, 126
    %v89 = vpop.permute.xlu0 %88
    %vm90 = vcmask 1031168
    %v91 = vsel %vm90, %v85, %v87
    %v92 = vsel %vm90, %v87, %v89
    %v96 = vadd.f32 %v72, %v91
    %v97 = vadd.f32 %v73, %v92
    %v98 = vadd.f32 %v74, %v89
    %v99 = vmul.f32 %v48, -0.11531475
    %v100 = vmul.f32 %v49, -0.11531475
    %v101 = vmul.f32 %v50, -0.11531475
    %105 = vrot.lane.b32.xlu0 %v99, 127
    %v106 = vpop.permute.xlu0 %105
    %107 = vrot.lane.b32.xlu0 %v100, 127
    %v108 = vpop.permute.xlu0 %107
    %109 = vrot.lane.b32.xlu0 %v101, 127
    %v110 = vpop.permute.xlu0 %109
    %v111 = vsel %vm66, %v106, %v108
    %v112 = vsel %vm66, %v108, %v110
    %v116 = vadd.f32 %v75, %v111
    %v117 = vadd.f32 %v76, %v112
    %v118 = vadd.f32 %v77, %v110
    %v119 = vmul.f32 %v48, 0.8864196
    %v120 = vmul.f32 %v49, 0.8864196
    %v121 = vmul.f32 %v50, 0.8864196
    %125 = vrot.lane.b32.xlu0 %v119, 125
    %v126 = vpop.permute.xlu0 %125
    %127 = vrot.lane.b32.xlu0 %v120, 125
    %v128 = vpop.permute.xlu0 %127
    %129 = vrot.lane.b32.xlu0 %v121, 125
    %v130 = vpop.permute.xlu0 %129
    %vm131 = vcmask 1022976
    %v132 = vsel %vm131, %v126, %v128
    %v133 = vsel %vm131, %v128, %v130
    %v137 = vadd.f32 %v96, %v132
    %v138 = vadd.f32 %v97, %v133
    %v139 = vadd.f32 %v98, %v130
    %140 = vrot.lane.b32.xlu0 %v119, 126
    %v141 = vpop.permute.xlu0 %140
    %142 = vrot.lane.b32.xlu0 %v120, 126
    %v143 = vpop.permute.xlu0 %142
    %144 = vrot.lane.b32.xlu0 %v121, 126
    %v145 = vpop.permute.xlu0 %144
    %v146 = vsel %vm90, %v141, %v143
    %v147 = vsel %vm90, %v143, %v145
    %v151 = vadd.f32 %v116, %v146
    %v152 = vadd.f32 %v117, %v147
    %v153 = vadd.f32 %v118, %v145
    %154 = vrot.lane.b32.xlu0 %v99, 124
    %v155 = vpop.permute.xlu0 %154
    %156 = vrot.lane.b32.xlu0 %v100, 124
    %v157 = vpop.permute.xlu0 %156
    %158 = vrot.lane.b32.xlu0 %v101, 124
    %v159 = vpop.permute.xlu0 %158
    %vm160 = vcmask 1014784
    %v161 = vsel %vm160, %v155, %v157
    %v162 = vsel %vm160, %v157, %v159
    %v166 = vadd.f32 %v137, %v161
    %v167 = vadd.f32 %v138, %v162
    %v168 = vadd.f32 %v139, %v159
    %169 = vrot.lane.b32.xlu0 %v78, 125
    %v170 = vpop.permute.xlu0 %169
    %171 = vrot.lane.b32.xlu0 %v79, 125
    %v172 = vpop.permute.xlu0 %171
    %173 = vrot.lane.b32.xlu0 %v80, 125
    %v174 = vpop.permute.xlu0 %173
    %v175 = vsel %vm131, %v170, %v172
    %v176 = vsel %vm131, %v172, %v174
    %v180 = vadd.f32 %v151, %v175
    %v181 = vadd.f32 %v152, %v176
    %v182 = vadd.f32 %v153, %v174
    %186 = vrot.lane.b32.xlu0 %v75, 123
    %v187 = vpop.permute.xlu0 %186
    %188 = vrot.lane.b32.xlu0 %v76, 123
    %v189 = vpop.permute.xlu0 %188
    %190 = vrot.lane.b32.xlu0 %v77, 123
    %v191 = vpop.permute.xlu0 %190
    %vm192 = vcmask 1006592
    %v193 = vsel %vm192, %v187, %v189
    %v194 = vsel %vm192, %v189, %v191
    %v198 = vadd.f32 %v166, %v193
    %v199 = vadd.f32 %v167, %v194
    %v200 = vadd.f32 %v168, %v191
    %201 = vrot.lane.b32.xlu0 %v54, 124
    %v202 = vpop.permute.xlu0 %201
    %203 = vrot.lane.b32.xlu0 %v55, 124
    %v204 = vpop.permute.xlu0 %203
    %205 = vrot.lane.b32.xlu0 %v56, 124
    %v206 = vpop.permute.xlu0 %205
    %v207 = vsel %vm160, %v202, %v204
    %v208 = vsel %vm160, %v204, %v206
    %v212 = vadd.f32 %v180, %v207
    %v213 = vadd.f32 %v181, %v208
    %v214 = vadd.f32 %v182, %v206
    %218 = vrot.lane.b32.xlu0 %v51, 123
    %v219 = vpop.permute.xlu0 %218
    %220 = vrot.lane.b32.xlu0 %v52, 123
    %v221 = vpop.permute.xlu0 %220
    %222 = vrot.lane.b32.xlu0 %v53, 123
    %v223 = vpop.permute.xlu0 %222
    %v224 = vsel %vm192, %v219, %v221
    %v225 = vsel %vm192, %v221, %v223
    %v229 = vadd.f32 %v212, %v224
    %v230 = vadd.f32 %v213, %v225
    %v231 = vadd.f32 %v214, %v223
    %235 = vrot.lane.b32.xlu0 %v198, 126
    %v236 = vpop.permute.xlu0 %235
    %237 = vrot.lane.b32.xlu0 %v199, 126
    %v238 = vpop.permute.xlu0 %237
    %239 = vrot.lane.b32.xlu0 %v200, 126
    %v240 = vpop.permute.xlu0 %239
    %v241 = vsel %vm90, %v236, %v238
    %v242 = vsel %vm90, %v238, %v240
    %245 = vst [vmem:[#allocation8] sm:$0xff] %v241
    %246 = vst [vmem:[#allocation8 + $0x8] sm:$0xff] %v242
    %250 = vrot.lane.b32.xlu0 %v229, 125
    %v251 = vpop.permute.xlu0 %250
    %252 = vrot.lane.b32.xlu0 %v230, 125
    %v253 = vpop.permute.xlu0 %252
    %254 = vrot.lane.b32.xlu0 %v231, 125
    %v255 = vpop.permute.xlu0 %254
    %v256 = vsel %vm131, %v251, %v253
    %v257 = vsel %vm131, %v253, %v255
    %s260 = scalar_lea.vmem [#allocation8], 16
    %261 = vst [vmem:[%s260] sm:$0xff] %v256
    %262 = vst [vmem:[%s260 + $0x8] sm:$0xff] %v257
    // Predicated region
    $region18: #{tpu_custom_call.1} parent=1 // pred_check
      _
    $region19: #{tpu_custom_call.1} parent=1 // pred_check_branch
      %264 = sbr.rel (0) target = $region21
    $region20: #{tpu_custom_call.1} parent=1 // pred_region
      %s266 = ssub.s32 512, 512
      %267 = vsyncadd [#allocation5], %s266
      %s268 = sshll.u32 [#allocation8], 4
      %s269 = int_to_ptr.vmem [resolvable:$true] %s268
      %274 = dma.vmem_to_hbm [thread:$0]  %s269, 512, %s2, [#allocation5], 256, 256, 16
    $region21: #{tpu_custom_call.1} parent=1 // pred_fallthru
      _
    // Predicated region
    $region22: #{tpu_custom_call.1} parent=1 // pred_check
      _
    $region23: #{tpu_custom_call.1} parent=1 // pred_check_branch
      %276 = sbr.rel (0) target = $region25
    $region24: #{tpu_custom_call.1} parent=1 // pred_region
      %277 = dma.done [#allocation5], 512
    $region25: #{tpu_custom_call.1} parent=1 // pred_fallthru
      _
    %278 = vsyncpa [#allocation4], 1
    %279 = vsyncpa [#allocation7], 1
    %280 = vsyncpa [#allocation5], 1

</llo_original>
